<compile_context>
chip_gen: v6e
topology: v6e:2x2x1
jax: 0.10.0
libtpu: 0.0.40
codegen_flags: <defaults>
</compile_context>

<pallas_src>
import functools

import jax
import jax.numpy as jnp
from jax.experimental import pallas as pl
from jax.experimental.pallas import tpu as pltpu


def _round_up(n, m):
    return ((n + m - 1) // m) * m


def _twinq_kernel(x_ref, w1_ref, b1_ref, w2_ref, b2_ref, w3_ref, q_ref,
                  *, compute_dtype):
    # x_ref: (8, TB) f32 -- rows 0..3 = [state | action], rows 4..7 = zeros.
    x = x_ref[...].astype(compute_dtype)

    def net(t):
        # Layer 1 (K=8, zero-padded from 4): MXU (it is otherwise idle here),
        # frees the VALU slot that is closest to saturating.
        h = jnp.dot(w1_ref[t], x, preferred_element_type=jnp.float32)   # (128, TB)
        h = jnp.maximum(h + b1_ref[t], 0.0)                             # f32 VPU
        # Layer 2 (128x128): the only FLOP-significant op. Weights were
        # pre-cast in the wrapper; only the activations are cast per tile.
        h2 = jnp.dot(w2_ref[t], h.astype(compute_dtype),
                     preferred_element_type=jnp.float32)                # (128, TB)
        h2 = jnp.maximum(h2 + b2_ref[t], 0.0)                           # f32 VPU
        # Layer 3 (single output): f32 VPU multiply + XLU sublane reduce.
        return jnp.sum(h2 * w3_ref[t], axis=0, keepdims=True)           # (1, TB)

    # Single lane-dense (2, TB) store; b3 is added in the wrapper.
    q_ref[...] = jnp.concatenate([net(0), net(1)], axis=0)


def twinq_forward(state, action, params, *, batch_tile=2048, bf16_matmul=True):
    """state: (B, 3), action: (B, 1), params: packed twin-net weights.

    Returns (q1, q2, min(q1, q2)), each of shape (B,), matching PyTorch TwinQ.
    """
    state = state.astype(jnp.float32)
    action = action.astype(jnp.float32)
    B = state.shape[0]

    # --- batch tiling --------------------------------------------------------
    # Batch lives on the lane (minor) dim inside the kernel, so tiles are
    # multiples of 128.  Per-grid-step overhead (~0.35 us) dwarfs per-tile
    # compute for this tiny MLP, so tiles default large; but keep >= 2 grid
    # steps when there is enough work so the "parallel" axis shards across
    # both v7x TensorCores.  Working set at tb=2048 is a few MB << VMEM.
    bp = _round_up(max(B, 1), 128)
    steps = pl.cdiv(bp, batch_tile)
    if steps == 1 and bp >= 256:
        steps = 2
    tb = _round_up(pl.cdiv(bp, steps), 128)
    bp = tb * steps

    # --- single lane-dense input slab: concat + zero-pad K 4->8 + transpose --
    x = jnp.concatenate([state, action], axis=1)            # (B, 4)
    x = jnp.pad(x, ((0, bp - B), (0, 4)))                   # (bp, 8)
    x_t = x.T                                                # (8, bp)

    compute_dtype = jnp.bfloat16 if bf16_matmul else jnp.float32
    # Hoist the matmul-operand casts out of the kernel: the weights are
    # grid-resident, so an in-kernel cast would re-run every grid step.
    w1 = params["w1"].astype(compute_dtype)                  # (2, 128, 8)
    w2 = params["w2"].astype(compute_dtype)                  # (2, 128, 128)
    b1 = params["b1"]                                        # (2, 128, 1) f32
    b2 = params["b2"]                                        # (2, 128, 1) f32
    w3 = params["w3"]                                        # (2, 128, 1) f32

    param_bytes = sum(int(p.size) * p.dtype.itemsize for p in (w1, b1, w2, b2, w3))
    cost = pl.CostEstimate(
        flops=2 * 2 * bp * (128 * 8 + 128 * 128 + 128),
        transcendentals=0,
        bytes_accessed=param_bytes + bp * (8 + 2) * 4,
    )

    q_t = pl.pallas_call(
        functools.partial(_twinq_kernel, compute_dtype=compute_dtype),
        out_shape=jax.ShapeDtypeStruct((2, bp), jnp.float32),
        grid=(bp // tb,),
        in_specs=[
            pl.BlockSpec((8, tb), lambda i: (0, i)),             # x tile
            pl.BlockSpec((2, 128, 8), lambda i: (0, 0, 0)),      # w1 (resident)
            pl.BlockSpec((2, 128, 1), lambda i: (0, 0, 0)),      # b1 (resident)
            pl.BlockSpec((2, 128, 128), lambda i: (0, 0, 0)),    # w2 (resident)
            pl.BlockSpec((2, 128, 1), lambda i: (0, 0, 0)),      # b2 (resident)
            pl.BlockSpec((2, 128, 1), lambda i: (0, 0, 0)),      # w3 (resident)
        ],
        out_specs=pl.BlockSpec((2, tb), lambda i: (0, i)),
        compiler_params=pltpu.CompilerParams(
            dimension_semantics=("parallel",),
            vmem_limit_bytes=32 * 1024 * 1024,
        ),
        cost_estimate=cost,
    )(x_t, w1, b1, w2, b2, w3)

    b3 = params["b3"]                                        # (2,) f32
    q1 = q_t[0, :B] + b3[0]
    q2 = q_t[1, :B] + b3[1]
    return q1, q2, jnp.minimum(q1, q2)


def init_twinq_params(key):
    """Deterministic init mimicking torch.nn.Linear (uniform +-1/sqrt(fan_in)).

    Weights are stored in the kernel's transposed layout:
      w1: (2, 128, 8)   torch (out,in) weight, K zero-padded 4 -> 8
      b1: (2, 128, 1)
      w2: (2, 128, 128) torch (out,in) weight
      b2: (2, 128, 1)
      w3: (2, 128, 1)   head column vector
      b3: (2,)          head biases (added in the wrapper)
    """
    def linear(key, fan_in, fan_out):
        kw, kb = jax.random.split(key)
        bound = 1.0 / jnp.sqrt(jnp.float32(fan_in))
        w = jax.random.uniform(kw, (fan_out, fan_in), jnp.float32, -bound, bound)
        b = jax.random.uniform(kb, (fan_out,), jnp.float32, -bound, bound)
        return w, b

    keys = jax.random.split(key, 6)
    w1a, b1a = linear(keys[0], 4, 128)
    w2a, b2a = linear(keys[1], 128, 128)
    w3a, b3a = linear(keys[2], 128, 1)
    w1b, b1b = linear(keys[3], 4, 128)
    w2b, b2b = linear(keys[4], 128, 128)
    w3b, b3b = linear(keys[5], 128, 1)

    pad_k = lambda w: jnp.pad(w, ((0, 0), (0, 4)))   # feature dim 4 -> 8 (zeros)
    return dict(
        w1=jnp.stack([pad_k(w1a), pad_k(w1b)]),            # (2, 128, 8)
        b1=jnp.stack([b1a, b1b])[:, :, None],               # (2, 128, 1)
        w2=jnp.stack([w2a, w2b]),                            # (2, 128, 128)
        b2=jnp.stack([b2a, b2b])[:, :, None],               # (2, 128, 1)
        w3=jnp.stack([w3a.T, w3b.T]),                        # (2, 128, 1)
        b3=jnp.stack([b3a[0], b3b[0]]),                      # (2,)
    )


def _twinq_reference(state, action, p, *, bf16=False):
    """Pure-JAX reference. With bf16=True it emulates the kernel's default
    path (bf16 matmul operands, f32 accumulation) for a tight comparison."""
    cd = jnp.bfloat16 if bf16 else jnp.float32
    x = jnp.concatenate([state, action], axis=1).astype(jnp.float32)    # (B, 4)

    def mm(a, b):
        return jnp.dot(a.astype(cd), b.astype(cd),
                       preferred_element_type=jnp.float32)

    def net(t):
        w1 = p["w1"][t][:, :4]                                           # (128, 4)
        h = jnp.maximum(mm(x, w1.T) + p["b1"][t][:, 0], 0.0)
        h = jnp.maximum(mm(h, p["w2"][t].T) + p["b2"][t][:, 0], 0.0)
        # Head done elementwise (exact f32), matching the kernel's VPU path.
        return jnp.sum(h * p["w3"][t][:, 0][None, :], axis=1) + p["b3"][t]

    q1, q2 = net(0), net(1)
    return q1, q2, jnp.minimum(q1, q2)


if __name__ == "__main__":
    key = jax.random.PRNGKey(0)
    kp, ks, ka = jax.random.split(key, 3)
    params = init_twinq_params(kp)

    # --- small batch (single grid step) --------------------------------------
    B = 8
    state = jax.random.normal(ks, (B, 3), jnp.float32)    # pendulum obs: 3 dims
    action = jax.random.normal(ka, (B, 1), jnp.float32)   # pendulum action: 1 dim

    r1, r2, rmin = _twinq_reference(state, action, params, bf16=False)
    rb1, rb2, rbmin = _twinq_reference(state, action, params, bf16=True)

    # Default path: bf16 MXU operands, f32 accumulation. Tight check against
    # a bf16-emulating reference; loose sanity check against pure f32.
    q1, q2, qmin = twinq_forward(state, action, params)
    jax.block_until_ready((q1, q2, qmin))
    assert q1.shape == (B,) and q2.shape == (B,) and qmin.shape == (B,)
    assert jnp.allclose(q1, rb1, atol=1e-3), "q1 mismatch vs bf16 reference"
    assert jnp.allclose(q2, rb2, atol=1e-3), "q2 mismatch vs bf16 reference"
    assert jnp.allclose(qmin, rbmin, atol=1e-3), "qmin mismatch vs bf16 reference"
    assert jnp.allclose(q1, r1, atol=5e-2, rtol=5e-2), "q1 far from f32 reference"
    assert jnp.allclose(q2, r2, atol=5e-2, rtol=5e-2), "q2 far from f32 reference"
    assert jnp.allclose(qmin, rmin, atol=5e-2, rtol=5e-2), "qmin far from f32 reference"

    # f32 MXU path (tolerance robust to either side using reduced-precision
    # f32 matmuls by default).
    f1, f2, fmin = twinq_forward(state, action, params, bf16_matmul=False)
    jax.block_until_ready((f1, f2, fmin))
    assert jnp.allclose(f1, r1, atol=3e-2, rtol=3e-2), "q1 mismatch (f32 path)"
    assert jnp.allclose(f2, r2, atol=3e-2, rtol=3e-2), "q2 mismatch (f32 path)"
    assert jnp.allclose(fmin, rmin, atol=3e-2, rtol=3e-2), "qmin mismatch (f32 path)"

    # --- ragged batch exercising padding + a multi-step "parallel" grid ------
    B2 = 300
    ks2, ka2 = jax.random.split(jax.random.PRNGKey(1))
    state2 = jax.random.normal(ks2, (B2, 3), jnp.float32)
    action2 = jax.random.normal(ka2, (B2, 1), jnp.float32)

    g1, g2, gmin = twinq_forward(state2, action2, params)   # forced >=2 steps
    jax.block_until_ready((g1, g2, gmin))
    hb1, hb2, hbmin = _twinq_reference(state2, action2, params, bf16=True)
    assert g1.shape == (B2,) and g2.shape == (B2,) and gmin.shape == (B2,)
    assert jnp.allclose(g1, hb1, atol=1e-3), "q1 mismatch vs reference (gridded)"
    assert jnp.allclose(g2, hb2, atol=1e-3), "q2 mismatch vs reference (gridded)"
    assert jnp.allclose(gmin, hbmin, atol=1e-3), "qmin mismatch vs reference (gridded)"

    print("KERNEL_OK")
</pallas_src>

<mosaic_0001>
module attributes {stable_mosaic.version = 11 : i64} {
  func.func @_twinq_kernel(%arg0: i32, %arg1: memref<8x128xf32, #tpu.memory_space<vmem>>, %arg2: memref<2x128x8xbf16, #tpu.memory_space<vmem>>, %arg3: memref<2x128x1xf32, #tpu.memory_space<vmem>>, %arg4: memref<2x128x128xbf16, #tpu.memory_space<vmem>>, %arg5: memref<2x128x1xf32, #tpu.memory_space<vmem>>, %arg6: memref<2x128x1xf32, #tpu.memory_space<vmem>>, %arg7: memref<2x128xf32, #tpu.memory_space<vmem>>) attributes {dimension_semantics = [#tpu.dimension_semantics<parallel>], iteration_bounds = array<i64: 1>, scalar_prefetch = 0 : i64, scratch_operands = 0 : i64, tpu.core_type = #tpu.core_type<tc>, window_params = [{transform_indices = @transform_0, window_bounds = array<i64: 8, 128>}, {pipeline_mode = #tpu.pipeline_mode<synchronous>, transform_indices = @transform_1, window_bounds = array<i64: 2, 128, 8>}, {pipeline_mode = #tpu.pipeline_mode<synchronous>, transform_indices = @transform_2, window_bounds = array<i64: 2, 128, 1>}, {pipeline_mode = #tpu.pipeline_mode<synchronous>, transform_indices = @transform_3, window_bounds = array<i64: 2, 128, 128>}, {pipeline_mode = #tpu.pipeline_mode<synchronous>, transform_indices = @transform_4, window_bounds = array<i64: 2, 128, 1>}, {pipeline_mode = #tpu.pipeline_mode<synchronous>, transform_indices = @transform_5, window_bounds = array<i64: 2, 128, 1>}, {transform_indices = @transform_6, window_bounds = array<i64: 2, 128>}]} {
    %c0 = arith.constant 0 : index
    %c0_0 = arith.constant 0 : index
    %0 = vector.load %arg1[%c0, %c0_0] : memref<8x128xf32, #tpu.memory_space<vmem>>, vector<8x128xf32>
    %1 = arith.truncf %0 : vector<8x128xf32> to vector<8x128xbf16>
    %c0_1 = arith.constant 0 : index
    %c0_2 = arith.constant 0 : index
    %c0_3 = arith.constant 0 : index
    %2 = vector.load %arg2[%c0_1, %c0_2, %c0_3] : memref<2x128x8xbf16, #tpu.memory_space<vmem>>, vector<1x128x8xbf16>
    %3 = vector.shape_cast %2 : vector<1x128x8xbf16> to vector<128x8xbf16>
    %cst = arith.constant dense<0.000000e+00> : vector<128x128xf32>
    %4 = tpu.matmul %3, %1, %cst {dimension_numbers = #tpu.dot_dimension_numbers<[1], [0], [0], [1], [0, 0, 1, 1], [], []>} : vector<128x8xbf16>, vector<8x128xbf16>, vector<128x128xf32> -> vector<128x128xf32>
    %c0_4 = arith.constant 0 : index
    %c0_5 = arith.constant 0 : index
    %c0_6 = arith.constant 0 : index
    %5 = vector.load %arg3[%c0_4, %c0_5, %c0_6] : memref<2x128x1xf32, #tpu.memory_space<vmem>>, vector<1x128x1xf32>
    %6 = vector.shape_cast %5 : vector<1x128x1xf32> to vector<128x1xf32>
    %7 = vector.broadcast %6 : vector<128x1xf32> to vector<128x128xf32>
    %8 = arith.addf %4, %7 : vector<128x128xf32>
    %cst_7 = arith.constant 0.000000e+00 : f32
    %9 = vector.broadcast %cst_7 : f32 to vector<128x128xf32>
    %10 = arith.maximumf %8, %9 : vector<128x128xf32>
    %c0_8 = arith.constant 0 : index
    %c0_9 = arith.constant 0 : index
    %c0_10 = arith.constant 0 : index
    %11 = vector.load %arg4[%c0_8, %c0_9, %c0_10] : memref<2x128x128xbf16, #tpu.memory_space<vmem>>, vector<1x128x128xbf16>
    %12 = vector.shape_cast %11 : vector<1x128x128xbf16> to vector<128x128xbf16>
    %13 = arith.truncf %10 : vector<128x128xf32> to vector<128x128xbf16>
    %cst_11 = arith.constant dense<0.000000e+00> : vector<128x128xf32>
    %14 = tpu.matmul %12, %13, %cst_11 {dimension_numbers = #tpu.dot_dimension_numbers<[1], [0], [0], [1], [0, 0, 1, 1], [], []>} : vector<128x128xbf16>, vector<128x128xbf16>, vector<128x128xf32> -> vector<128x128xf32>
    %c0_12 = arith.constant 0 : index
    %c0_13 = arith.constant 0 : index
    %c0_14 = arith.constant 0 : index
    %15 = vector.load %arg5[%c0_12, %c0_13, %c0_14] : memref<2x128x1xf32, #tpu.memory_space<vmem>>, vector<1x128x1xf32>
    %16 = vector.shape_cast %15 : vector<1x128x1xf32> to vector<128x1xf32>
    %17 = vector.broadcast %16 : vector<128x1xf32> to vector<128x128xf32>
    %18 = arith.addf %14, %17 : vector<128x128xf32>
    %cst_15 = arith.constant 0.000000e+00 : f32
    %19 = vector.broadcast %cst_15 : f32 to vector<128x128xf32>
    %20 = arith.maximumf %18, %19 : vector<128x128xf32>
    %c0_16 = arith.constant 0 : index
    %c0_17 = arith.constant 0 : index
    %c0_18 = arith.constant 0 : index
    %21 = vector.load %arg6[%c0_16, %c0_17, %c0_18] : memref<2x128x1xf32, #tpu.memory_space<vmem>>, vector<1x128x1xf32>
    %22 = vector.shape_cast %21 : vector<1x128x1xf32> to vector<128x1xf32>
    %23 = vector.broadcast %22 : vector<128x1xf32> to vector<128x128xf32>
    %24 = arith.mulf %20, %23 : vector<128x128xf32>
    %cst_19 = arith.constant dense<0.000000e+00> : vector<128xf32>
    %25 = vector.multi_reduction <add>, %24, %cst_19 [0] : vector<128x128xf32> to vector<128xf32>
    %26 = vector.shape_cast %25 : vector<128xf32> to vector<1x128xf32>
    %c1 = arith.constant 1 : index
    %c0_20 = arith.constant 0 : index
    %c0_21 = arith.constant 0 : index
    %27 = vector.load %arg2[%c1, %c0_20, %c0_21] : memref<2x128x8xbf16, #tpu.memory_space<vmem>>, vector<1x128x8xbf16>
    %28 = vector.shape_cast %27 : vector<1x128x8xbf16> to vector<128x8xbf16>
    %cst_22 = arith.constant dense<0.000000e+00> : vector<128x128xf32>
    %29 = tpu.matmul %28, %1, %cst_22 {dimension_numbers = #tpu.dot_dimension_numbers<[1], [0], [0], [1], [0, 0, 1, 1], [], []>} : vector<128x8xbf16>, vector<8x128xbf16>, vector<128x128xf32> -> vector<128x128xf32>
    %c1_23 = arith.constant 1 : index
    %c0_24 = arith.constant 0 : index
    %c0_25 = arith.constant 0 : index
    %30 = vector.load %arg3[%c1_23, %c0_24, %c0_25] : memref<2x128x1xf32, #tpu.memory_space<vmem>>, vector<1x128x1xf32>
    %31 = vector.shape_cast %30 : vector<1x128x1xf32> to vector<128x1xf32>
    %32 = vector.broadcast %31 : vector<128x1xf32> to vector<128x128xf32>
    %33 = arith.addf %29, %32 : vector<128x128xf32>
    %cst_26 = arith.constant 0.000000e+00 : f32
    %34 = vector.broadcast %cst_26 : f32 to vector<128x128xf32>
    %35 = arith.maximumf %33, %34 : vector<128x128xf32>
    %c1_27 = arith.constant 1 : index
    %c0_28 = arith.constant 0 : index
    %c0_29 = arith.constant 0 : index
    %36 = vector.load %arg4[%c1_27, %c0_28, %c0_29] : memref<2x128x128xbf16, #tpu.memory_space<vmem>>, vector<1x128x128xbf16>
    %37 = vector.shape_cast %36 : vector<1x128x128xbf16> to vector<128x128xbf16>
    %38 = arith.truncf %35 : vector<128x128xf32> to vector<128x128xbf16>
    %cst_30 = arith.constant dense<0.000000e+00> : vector<128x128xf32>
    %39 = tpu.matmul %37, %38, %cst_30 {dimension_numbers = #tpu.dot_dimension_numbers<[1], [0], [0], [1], [0, 0, 1, 1], [], []>} : vector<128x128xbf16>, vector<128x128xbf16>, vector<128x128xf32> -> vector<128x128xf32>
    %c1_31 = arith.constant 1 : index
    %c0_32 = arith.constant 0 : index
    %c0_33 = arith.constant 0 : index
    %40 = vector.load %arg5[%c1_31, %c0_32, %c0_33] : memref<2x128x1xf32, #tpu.memory_space<vmem>>, vector<1x128x1xf32>
    %41 = vector.shape_cast %40 : vector<1x128x1xf32> to vector<128x1xf32>
    %42 = vector.broadcast %41 : vector<128x1xf32> to vector<128x128xf32>
    %43 = arith.addf %39, %42 : vector<128x128xf32>
    %cst_34 = arith.constant 0.000000e+00 : f32
    %44 = vector.broadcast %cst_34 : f32 to vector<128x128xf32>
    %45 = arith.maximumf %43, %44 : vector<128x128xf32>
    %c1_35 = arith.constant 1 : index
    %c0_36 = arith.constant 0 : index
    %c0_37 = arith.constant 0 : index
    %46 = vector.load %arg6[%c1_35, %c0_36, %c0_37] : memref<2x128x1xf32, #tpu.memory_space<vmem>>, vector<1x128x1xf32>
    %47 = vector.shape_cast %46 : vector<1x128x1xf32> to vector<128x1xf32>
    %48 = vector.broadcast %47 : vector<128x1xf32> to vector<128x128xf32>
    %49 = arith.mulf %45, %48 : vector<128x128xf32>
    %cst_38 = arith.constant dense<0.000000e+00> : vector<128xf32>
    %50 = vector.multi_reduction <add>, %49, %cst_38 [0] : vector<128x128xf32> to vector<128xf32>
    %51 = vector.shape_cast %50 : vector<128xf32> to vector<1x128xf32>
    %52 = tpu.concatenate %26, %51 in 0 : vector<1x128xf32>, vector<1x128xf32> -> vector<2x128xf32>
    %c0_39 = arith.constant 0 : index
    %c0_40 = arith.constant 0 : index
    %53 = vector.load %arg7[%c0_39, %c0_40] : memref<2x128xf32, #tpu.memory_space<vmem>>, vector<2x128xf32>
    tpu.vector_store %arg7[%c0_39, %c0_40], %52 {strides = array<i32>} : memref<2x128xf32, #tpu.memory_space<vmem>>, vector<2x128xf32>,
    return
  }
  func.func @transform_0(%arg0: i32) -> (i32, i32) {
    %c0_i32 = arith.constant 0 : i32
    %c0_i32_0 = arith.constant 0 : i32
    return %c0_i32, %arg0 : i32, i32
  }
  func.func @transform_1(%arg0: i32) -> (i32, i32, i32) {
    %c0_i32 = arith.constant 0 : i32
    %c0_i32_0 = arith.constant 0 : i32
    %c0_i32_1 = arith.constant 0 : i32
    %c0_i32_2 = arith.constant 0 : i32
    return %c0_i32, %c0_i32_0, %c0_i32_1 : i32, i32, i32
  }
  func.func @transform_2(%arg0: i32) -> (i32, i32, i32) {
    %c0_i32 = arith.constant 0 : i32
    %c0_i32_0 = arith.constant 0 : i32
    %c0_i32_1 = arith.constant 0 : i32
    %c0_i32_2 = arith.constant 0 : i32
    return %c0_i32, %c0_i32_0, %c0_i32_1 : i32, i32, i32
  }
  func.func @transform_3(%arg0: i32) -> (i32, i32, i32) {
    %c0_i32 = arith.constant 0 : i32
    %c0_i32_0 = arith.constant 0 : i32
    %c0_i32_1 = arith.constant 0 : i32
    %c0_i32_2 = arith.constant 0 : i32
    return %c0_i32, %c0_i32_0, %c0_i32_1 : i32, i32, i32
  }
  func.func @transform_4(%arg0: i32) -> (i32, i32, i32) {
    %c0_i32 = arith.constant 0 : i32
    %c0_i32_0 = arith.constant 0 : i32
    %c0_i32_1 = arith.constant 0 : i32
    %c0_i32_2 = arith.constant 0 : i32
    return %c0_i32, %c0_i32_0, %c0_i32_1 : i32, i32, i32
  }
  func.func @transform_5(%arg0: i32) -> (i32, i32, i32) {
    %c0_i32 = arith.constant 0 : i32
    %c0_i32_0 = arith.constant 0 : i32
    %c0_i32_1 = arith.constant 0 : i32
    %c0_i32_2 = arith.constant 0 : i32
    return %c0_i32, %c0_i32_0, %c0_i32_1 : i32, i32, i32
  }
  func.func @transform_6(%arg0: i32) -> (i32, i32) {
    %c0_i32 = arith.constant 0 : i32
    %c0_i32_0 = arith.constant 0 : i32
    return %c0_i32, %arg0 : i32, i32
  }
}

</mosaic_0001>

<llo_original>
// kernel: tpu_custom_call.1
$region0: #{tpu_custom_call.1}
  #allocation0 [shape = 'u32[]', space=smem, size = 0x4, offset = 0x4, fixed_abs, tag = 'smem constant byte address 0x4 - core index']
  #allocation1 [shape = 'u32[144,128]{1,0:T(1,128)}', space=vmem, size = 0x12000, scoped, tag = 'internal scratch']
  %s0 = inlined_call_operand.vmem [shape: f32[8,128], index: 0, kind: input, shape index: {}]
  %s1 = inlined_call_operand.vmem [shape: bf16[2,128,8], index: 1, kind: input, shape index: {}]
  %s2 = inlined_call_operand.vmem [shape: f32[2,128,1], index: 2, kind: input, shape index: {}]
  %s3 = inlined_call_operand.vmem [shape: bf16[2,128,128], index: 3, kind: input, shape index: {}]
  %s4 = inlined_call_operand.vmem [shape: f32[2,128,1], index: 4, kind: input, shape index: {}]
  %s5 = inlined_call_operand.vmem [shape: f32[2,128,1], index: 5, kind: input, shape index: {}]
  %s6 = inlined_call_operand.hbm [shape: f32[2,128], index: 6, kind: output, shape index: {}]
  %s7 = sld [smem:[#allocation0]]
  $region34: #{tpu_custom_call.1} parent=0
    _
  %s9 = ssub.s32 1, %s7
  %s10 = scalar_select 0, %s9, %s7
  $region1: #{tpu_custom_call.1} parent=0
    #allocation2 [shape = 'u8[1024]{0}', space=vmem, size = 0x400, scoped, tag = 'output window, operand 0, single buffered']
    #allocation3 [shape = 's32[1]{0}', space=sflag, size = 0x4, scoped, tag = 'scoped memory for tpu_custom_call.1']
    %11 = vsyncpa [#allocation3], 0
    // Predicated region
    $region2: #{tpu_custom_call.1} parent=1 // pred_check
      _
    $region3: #{tpu_custom_call.1} parent=1 // pred_check_branch
      %13 = sbr.rel (0) target = $region5
    $region4: #{tpu_custom_call.1} parent=1 // pred_region
      _
    $region5: #{tpu_custom_call.1} parent=1 // pred_fallthru
      _
    // Predicated region
    $region6: #{tpu_custom_call.1} parent=1 // pred_check
      _
    $region7: #{tpu_custom_call.1} parent=1 // pred_check_branch
      %15 = sbr.rel (0) target = $region9
    $region8: #{tpu_custom_call.1} parent=1 // pred_region
      _
    $region9: #{tpu_custom_call.1} parent=1 // pred_fallthru
      _
    // Predicated region
    $region10: #{tpu_custom_call.1} parent=1 // pred_check
      _
    $region11: #{tpu_custom_call.1} parent=1 // pred_check_branch
      %17 = sbr.rel (0) target = $region13
    $region12: #{tpu_custom_call.1} parent=1 // pred_region
      _
    $region13: #{tpu_custom_call.1} parent=1 // pred_fallthru
      _
    // Predicated region
    $region14: #{tpu_custom_call.1} parent=1 // pred_check
      _
    $region15: #{tpu_custom_call.1} parent=1 // pred_check_branch
      %19 = sbr.rel (0) target = $region17
    $region16: #{tpu_custom_call.1} parent=1 // pred_region
      _
    $region17: #{tpu_custom_call.1} parent=1 // pred_fallthru
      _
    // Predicated region
    $region18: #{tpu_custom_call.1} parent=1 // pred_check
      _
    $region19: #{tpu_custom_call.1} parent=1 // pred_check_branch
      %21 = sbr.rel (0) target = $region21
    $region20: #{tpu_custom_call.1} parent=1 // pred_region
      _
    $region21: #{tpu_custom_call.1} parent=1 // pred_fallthru
      _
    // Predicated region
    $region22: #{tpu_custom_call.1} parent=1 // pred_check
      _
    $region23: #{tpu_custom_call.1} parent=1 // pred_check_branch
      %23 = sbr.rel (0) target = $region25
    $region24: #{tpu_custom_call.1} parent=1 // pred_region
      _
    $region25: #{tpu_custom_call.1} parent=1 // pred_fallthru
      _
    %v25 = vld [vmem:[%s0] sm:$0xff]
    %v26 = vpack.c.bf16 %v25, %v25
    %v27 = vld [vmem:[%s1] sm:$0xf]
    %v28 = vld [vmem:[%s1 + $0x4] sm:$0xf]
    %v29 = vld [vmem:[%s1 + $0x8] sm:$0xf]
    %v30 = vld [vmem:[%s1 + $0xc] sm:$0xf]
    %v31 = vld [vmem:[%s1 + $0x10] sm:$0xf]
    %v32 = vld [vmem:[%s1 + $0x14] sm:$0xf]
    %v33 = vld [vmem:[%s1 + $0x18] sm:$0xf]
    %v34 = vld [vmem:[%s1 + $0x1c] sm:$0xf]
    %v35 = vld [vmem:[%s1 + $0x20] sm:$0xf]
    %v36 = vld [vmem:[%s1 + $0x24] sm:$0xf]
    %v37 = vld [vmem:[%s1 + $0x28] sm:$0xf]
    %v38 = vld [vmem:[%s1 + $0x2c] sm:$0xf]
    %v39 = vld [vmem:[%s1 + $0x30] sm:$0xf]
    %v40 = vld [vmem:[%s1 + $0x34] sm:$0xf]
    %v41 = vld [vmem:[%s1 + $0x38] sm:$0xf]
    %v42 = vld [vmem:[%s1 + $0x3c] sm:$0xf]
    %v43 = vld [vmem:[%s2] sm:$0xff]
    %v44 = vld [vmem:[%s2 + $0x8] sm:$0xff]
    %v45 = vld [vmem:[%s2 + $0x10] sm:$0xff]
    %v46 = vld [vmem:[%s2 + $0x18] sm:$0xff]
    %v47 = vld [vmem:[%s2 + $0x20] sm:$0xff]
    %v48 = vld [vmem:[%s2 + $0x28] sm:$0xff]
    %v49 = vld [vmem:[%s2 + $0x30] sm:$0xff]
    %v50 = vld [vmem:[%s2 + $0x38] sm:$0xff]
    %v51 = vld [vmem:[%s2 + $0x40] sm:$0xff]
    %v52 = vld [vmem:[%s2 + $0x48] sm:$0xff]
    %v53 = vld [vmem:[%s2 + $0x50] sm:$0xff]
    %v54 = vld [vmem:[%s2 + $0x58] sm:$0xff]
    %v55 = vld [vmem:[%s2 + $0x60] sm:$0xff]
    %v56 = vld [vmem:[%s2 + $0x68] sm:$0xff]
    %v57 = vld [vmem:[%s2 + $0x70] sm:$0xff]
    %v58 = vld [vmem:[%s2 + $0x78] sm:$0xff]
    %60 = vset.pattern.permute.xlu0 0
    %61 = vperm.xlu0 %60, %v43
    %v62 = vpop.permute.xlu0 %61
    %65 = vset.pattern.permute.xlu0 0
    %66 = vperm.xlu0 %65, %v44
    %v67 = vpop.permute.xlu0 %66
    %70 = vset.pattern.permute.xlu0 0
    %71 = vperm.xlu0 %70, %v45
    %v72 = vpop.permute.xlu0 %71
    %75 = vset.pattern.permute.xlu0 0
    %76 = vperm.xlu0 %75, %v46
    %v77 = vpop.permute.xlu0 %76
    %80 = vset.pattern.permute.xlu0 0
    %81 = vperm.xlu0 %80, %v47
    %v82 = vpop.permute.xlu0 %81
    %85 = vset.pattern.permute.xlu0 0
    %86 = vperm.xlu0 %85, %v48
    %v87 = vpop.permute.xlu0 %86
    %90 = vset.pattern.permute.xlu0 0
    %91 = vperm.xlu0 %90, %v49
    %v92 = vpop.permute.xlu0 %91
    %95 = vset.pattern.permute.xlu0 0
    %96 = vperm.xlu0 %95, %v50
    %v97 = vpop.permute.xlu0 %96
    %100 = vset.pattern.permute.xlu0 0
    %101 = vperm.xlu0 %100, %v51
    %v102 = vpop.permute.xlu0 %101
    %105 = vset.pattern.permute.xlu0 0
    %106 = vperm.xlu0 %105, %v52
    %v107 = vpop.permute.xlu0 %106
    %110 = vset.pattern.permute.xlu0 0
    %111 = vperm.xlu0 %110, %v53
    %v112 = vpop.permute.xlu0 %111
    %115 = vset.pattern.permute.xlu0 0
    %116 = vperm.xlu0 %115, %v54
    %v117 = vpop.permute.xlu0 %116
    %120 = vset.pattern.permute.xlu0 0
    %121 = vperm.xlu0 %120, %v55
    %v122 = vpop.permute.xlu0 %121
    %125 = vset.pattern.permute.xlu0 0
    %126 = vperm.xlu0 %125, %v56
    %v127 = vpop.permute.xlu0 %126
    %130 = vset.pattern.permute.xlu0 0
    %131 = vperm.xlu0 %130, %v57
    %v132 = vpop.permute.xlu0 %131
    %135 = vset.pattern.permute.xlu0 0
    %136 = vperm.xlu0 %135, %v58
    %v137 = vpop.permute.xlu0 %136
    %v155 = vunpack.c.l.b16 %v27
    %v156 = vunpack.c.l.b16 %v28
    %v157 = vunpack.c.l.b16 %v29
    %v158 = vunpack.c.l.b16 %v30
    %v159 = vunpack.c.l.b16 %v31
    %v160 = vunpack.c.l.b16 %v32
    %v161 = vunpack.c.l.b16 %v33
    %v162 = vunpack.c.l.b16 %v34
    %v163 = vunpack.c.l.b16 %v35
    %v164 = vunpack.c.l.b16 %v36
    %v165 = vunpack.c.l.b16 %v37
    %v166 = vunpack.c.l.b16 %v38
    %v167 = vunpack.c.l.b16 %v39
    %v168 = vunpack.c.l.b16 %v40
    %v169 = vunpack.c.l.b16 %v41
    %v170 = vunpack.c.l.b16 %v42
    %v171 = vpack.c.b16 %v156, %v155
    %v172 = vpack.c.b16 %v158, %v157
    %v173 = vpack.c.b16 %v160, %v159
    %v174 = vpack.c.b16 %v162, %v161
    %v175 = vpack.c.b16 %v164, %v163
    %v176 = vpack.c.b16 %v166, %v165
    %v177 = vpack.c.b16 %v168, %v167
    %v178 = vpack.c.b16 %v170, %v169
    %vm179 = vcmask 64512
    %v181 = vsel %vm179, %v171, 0
    %v184 = vsel %vm179, %v172, 0
    %v187 = vsel %vm179, %v173, 0
    %v190 = vsel %vm179, %v174, 0
    %v193 = vsel %vm179, %v175, 0
    %v196 = vsel %vm179, %v176, 0
    %v199 = vsel %vm179, %v177, 0
    %v202 = vsel %vm179, %v178, 0
    %vm204 = vcmask 1043456
    %v206 = vsel %vm204, %v26, 0
    %208 = vmatprep.subr.bf16.mxu0 0
    %209 = vmatpush1.bf16.msra.mxu0 0
    %210 = vmatprep.subr.bf16.mxu0 0
    %211 = vmatpush1.bf16.msra.mxu0 0
    %212 = vmatprep.subr.bf16.mxu0 0
    %213 = vmatpush1.bf16.msra.mxu0 0
    %214 = vmatprep.subr.bf16.mxu0 0
    %215 = vmatpush1.bf16.msra.mxu0 0
    %216 = vmatprep.subr.bf16.mxu0 0
    %217 = vmatpush1.bf16.msra.mxu0 0
    %218 = vmatprep.subr.bf16.mxu0 0
    %219 = vmatpush1.bf16.msra.mxu0 0
    %220 = vmatprep.subr.bf16.mxu0 0
    %221 = vmatpush1.bf16.msra.mxu0 0
    %222 = vmatprep.subr.bf16.mxu0 0
    %223 = vmatpush1.bf16.msra.mxu0 %v206
    %224 = vmatprep.subr.bf16.mxu0 0
    %225 = vmatpush2.bf16.msra.mxu0 0
    %226 = vmatprep.subr.bf16.mxu0 0
    %227 = vmatpush2.bf16.msra.mxu0 0
    %228 = vmatprep.subr.bf16.mxu0 0
    %229 = vmatpush2.bf16.msra.mxu0 0
    %230 = vmatprep.subr.bf16.mxu0 0
    %231 = vmatpush2.bf16.msra.mxu0 0
    %232 = vmatprep.subr.bf16.mxu0 0
    %233 = vmatpush2.bf16.msra.mxu0 0
    %234 = vmatprep.subr.bf16.mxu0 0
    %235 = vmatpush2.bf16.msra.mxu0 0
    %236 = vmatprep.subr.bf16.mxu0 0
    %237 = vmatpush2.bf16.msra.mxu0 0
    %238 = vmatprep.subr.bf16.mxu0 0
    %239 = vmatpush2.bf16.msra.mxu0 0
    %240 = vmatprep.mubr.bf16.mxu0 0
    %241 = vmatmul.mubr.bf16.gmra.mxu0 %v181
    %v242 = vpop.f32.mrf.mxu0
    %v243 = vadd.f32 %v62, %v242
    %v244 = vpop.f32.mrf.mxu0
    %v245 = vpop.f32.mrf.mxu0
    %v246 = vadd.f32 %v67, %v245
    %v247 = vpop.f32.mrf.mxu0
    %248 = vmatprep.mubr.bf16.mxu0 0
    %249 = vmatmul.mubr.bf16.gmra.mxu0 %v184
    %v250 = vpop.f32.mrf.mxu0
    %v251 = vadd.f32 %v72, %v250
    %v252 = vpop.f32.mrf.mxu0
    %v253 = vpop.f32.mrf.mxu0
    %v254 = vadd.f32 %v77, %v253
    %v255 = vpop.f32.mrf.mxu0
    %256 = vmatprep.mubr.bf16.mxu0 0
    %257 = vmatmul.mubr.bf16.gmra.mxu0 %v187
    %v258 = vpop.f32.mrf.mxu0
    %v259 = vadd.f32 %v82, %v258
    %v260 = vpop.f32.mrf.mxu0
    %v261 = vpop.f32.mrf.mxu0
    %v262 = vadd.f32 %v87, %v261
    %v263 = vpop.f32.mrf.mxu0
    %264 = vmatprep.mubr.bf16.mxu0 0
    %265 = vmatmul.mubr.bf16.gmra.mxu0 %v190
    %v266 = vpop.f32.mrf.mxu0
    %v267 = vadd.f32 %v92, %v266
    %v268 = vpop.f32.mrf.mxu0
    %v269 = vpop.f32.mrf.mxu0
    %v270 = vadd.f32 %v97, %v269
    %v271 = vpop.f32.mrf.mxu0
    %272 = vmatprep.mubr.bf16.mxu0 0
    %273 = vmatmul.mubr.bf16.gmra.mxu0 %v193
    %v274 = vpop.f32.mrf.mxu0
    %v275 = vadd.f32 %v102, %v274
    %v276 = vpop.f32.mrf.mxu0
    %v277 = vpop.f32.mrf.mxu0
    %v278 = vadd.f32 %v107, %v277
    %v279 = vpop.f32.mrf.mxu0
    %280 = vmatprep.mubr.bf16.mxu0 0
    %281 = vmatmul.mubr.bf16.gmra.mxu0 %v196
    %v282 = vpop.f32.mrf.mxu0
    %v283 = vadd.f32 %v112, %v282
    %v284 = vpop.f32.mrf.mxu0
    %v285 = vpop.f32.mrf.mxu0
    %v286 = vadd.f32 %v117, %v285
    %v287 = vpop.f32.mrf.mxu0
    %288 = vmatprep.mubr.bf16.mxu0 0
    %289 = vmatmul.mubr.bf16.gmra.mxu0 %v199
    %v290 = vpop.f32.mrf.mxu0
    %v291 = vadd.f32 %v122, %v290
    %v292 = vpop.f32.mrf.mxu0
    %v293 = vpop.f32.mrf.mxu0
    %v294 = vadd.f32 %v127, %v293
    %v295 = vpop.f32.mrf.mxu0
    %296 = vmatprep.mubr.bf16.mxu0 0
    %297 = vmatmul.mubr.bf16.gmra.mxu0 %v202
    %v298 = vpop.f32.mrf.mxu0
    %v299 = vadd.f32 %v132, %v298
    %v300 = vpop.f32.mrf.mxu0
    %v301 = vpop.f32.mrf.mxu0
    %v302 = vadd.f32 %v137, %v301
    %v303 = vpop.f32.mrf.mxu0
    %304 = vdwg.mxu0
    %v305 = vmax.f32 %v243, 0.0
    %v306 = vmax.f32 %v246, 0.0
    %v307 = vmax.f32 %v251, 0.0
    %v308 = vmax.f32 %v254, 0.0
    %v309 = vmax.f32 %v259, 0.0
    %v310 = vmax.f32 %v262, 0.0
    %v311 = vmax.f32 %v267, 0.0
    %v312 = vmax.f32 %v270, 0.0
    %v313 = vmax.f32 %v275, 0.0
    %v314 = vmax.f32 %v278, 0.0
    %v315 = vmax.f32 %v283, 0.0
    %v316 = vmax.f32 %v286, 0.0
    %v317 = vmax.f32 %v291, 0.0
    %v318 = vmax.f32 %v294, 0.0
    %v319 = vmax.f32 %v299, 0.0
    %v320 = vmax.f32 %v302, 0.0
    %v321 = vld [vmem:[%s3] sm:$0xf]
    %v322 = vld [vmem:[%s3 + $0x4] sm:$0xf]
    %v323 = vld [vmem:[%s3 + $0x8] sm:$0xf]
    %v324 = vld [vmem:[%s3 + $0xc] sm:$0xf]
    %v325 = vld [vmem:[%s3 + $0x10] sm:$0xf]
    %v326 = vld [vmem:[%s3 + $0x14] sm:$0xf]
    %v327 = vld [vmem:[%s3 + $0x18] sm:$0xf]
    %v328 = vld [vmem:[%s3 + $0x1c] sm:$0xf]
    %v329 = vld [vmem:[%s3 + $0x20] sm:$0xf]
    %v330 = vld [vmem:[%s3 + $0x24] sm:$0xf]
    %v331 = vld [vmem:[%s3 + $0x28] sm:$0xf]
    %v332 = vld [vmem:[%s3 + $0x2c] sm:$0xf]
    %v333 = vld [vmem:[%s3 + $0x30] sm:$0xf]
    %v334 = vld [vmem:[%s3 + $0x34] sm:$0xf]
    %v335 = vld [vmem:[%s3 + $0x38] sm:$0xf]
    %v336 = vld [vmem:[%s3 + $0x3c] sm:$0xf]
    %v337 = vpack.c.bf16 %v306, %v305
    %v338 = vpack.c.bf16 %v308, %v307
    %v339 = vpack.c.bf16 %v310, %v309
    %v340 = vpack.c.bf16 %v312, %v311
    %v341 = vpack.c.bf16 %v314, %v313
    %v342 = vpack.c.bf16 %v316, %v315
    %v343 = vpack.c.bf16 %v318, %v317
    %v344 = vpack.c.bf16 %v320, %v319
    %v345 = vld [vmem:[%s4] sm:$0xff]
    %v346 = vld [vmem:[%s4 + $0x8] sm:$0xff]
    %v347 = vld [vmem:[%s4 + $0x10] sm:$0xff]
    %v348 = vld [vmem:[%s4 + $0x18] sm:$0xff]
    %v349 = vld [vmem:[%s4 + $0x20] sm:$0xff]
    %v350 = vld [vmem:[%s4 + $0x28] sm:$0xff]
    %v351 = vld [vmem:[%s4 + $0x30] sm:$0xff]
    %v352 = vld [vmem:[%s4 + $0x38] sm:$0xff]
    %v353 = vld [vmem:[%s4 + $0x40] sm:$0xff]
    %v354 = vld [vmem:[%s4 + $0x48] sm:$0xff]
    %v355 = vld [vmem:[%s4 + $0x50] sm:$0xff]
    %v356 = vld [vmem:[%s4 + $0x58] sm:$0xff]
    %v357 = vld [vmem:[%s4 + $0x60] sm:$0xff]
    %v358 = vld [vmem:[%s4 + $0x68] sm:$0xff]
    %v359 = vld [vmem:[%s4 + $0x70] sm:$0xff]
    %v360 = vld [vmem:[%s4 + $0x78] sm:$0xff]
    %362 = vset.pattern.permute.xlu0 0
    %363 = vperm.xlu0 %362, %v345
    %v364 = vpop.permute.xlu0 %363
    %367 = vset.pattern.permute.xlu0 0
    %368 = vperm.xlu0 %367, %v346
    %v369 = vpop.permute.xlu0 %368
    %372 = vset.pattern.permute.xlu0 0
    %373 = vperm.xlu0 %372, %v347
    %v374 = vpop.permute.xlu0 %373
    %377 = vset.pattern.permute.xlu0 0
    %378 = vperm.xlu0 %377, %v348
    %v379 = vpop.permute.xlu0 %378
    %382 = vset.pattern.permute.xlu0 0
    %383 = vperm.xlu0 %382, %v349
    %v384 = vpop.permute.xlu0 %383
    %387 = vset.pattern.permute.xlu0 0
    %388 = vperm.xlu0 %387, %v350
    %v389 = vpop.permute.xlu0 %388
    %392 = vset.pattern.permute.xlu0 0
    %393 = vperm.xlu0 %392, %v351
    %v394 = vpop.permute.xlu0 %393
    %397 = vset.pattern.permute.xlu0 0
    %398 = vperm.xlu0 %397, %v352
    %v399 = vpop.permute.xlu0 %398
    %402 = vset.pattern.permute.xlu0 0
    %403 = vperm.xlu0 %402, %v353
    %v404 = vpop.permute.xlu0 %403
    %407 = vset.pattern.permute.xlu0 0
    %408 = vperm.xlu0 %407, %v354
    %v409 = vpop.permute.xlu0 %408
    %412 = vset.pattern.permute.xlu0 0
    %413 = vperm.xlu0 %412, %v355
    %v414 = vpop.permute.xlu0 %413
    %417 = vset.pattern.permute.xlu0 0
    %418 = vperm.xlu0 %417, %v356
    %v419 = vpop.permute.xlu0 %418
    %422 = vset.pattern.permute.xlu0 0
    %423 = vperm.xlu0 %422, %v357
    %v424 = vpop.permute.xlu0 %423
    %427 = vset.pattern.permute.xlu0 0
    %428 = vperm.xlu0 %427, %v358
    %v429 = vpop.permute.xlu0 %428
    %432 = vset.pattern.permute.xlu0 0
    %433 = vperm.xlu0 %432, %v359
    %v434 = vpop.permute.xlu0 %433
    %437 = vset.pattern.permute.xlu0 0
    %438 = vperm.xlu0 %437, %v360
    %v439 = vpop.permute.xlu0 %438
    %v457 = vunpack.c.l.b16 %v321
    %v458 = vunpack.c.l.b16 %v322
    %v459 = vunpack.c.l.b16 %v323
    %v460 = vunpack.c.l.b16 %v324
    %v461 = vunpack.c.l.b16 %v325
    %v462 = vunpack.c.l.b16 %v326
    %v463 = vunpack.c.l.b16 %v327
    %v464 = vunpack.c.l.b16 %v328
    %v465 = vunpack.c.l.b16 %v329
    %v466 = vunpack.c.l.b16 %v330
    %v467 = vunpack.c.l.b16 %v331
    %v468 = vunpack.c.l.b16 %v332
    %v469 = vunpack.c.l.b16 %v333
    %v470 = vunpack.c.l.b16 %v334
    %v471 = vunpack.c.l.b16 %v335
    %v472 = vunpack.c.l.b16 %v336
    %v473 = vpack.c.b16 %v458, %v457
    %v474 = vpack.c.b16 %v460, %v459
    %v475 = vpack.c.b16 %v462, %v461
    %v476 = vpack.c.b16 %v464, %v463
    %v477 = vpack.c.b16 %v466, %v465
    %v478 = vpack.c.b16 %v468, %v467
    %v479 = vpack.c.b16 %v470, %v469
    %v480 = vpack.c.b16 %v472, %v471
    %489 = vmatprep.subr.bf16.mxu0 0
    %490 = vmatpush1.bf16.msra.mxu0 %v344
    %491 = vmatprep.subr.bf16.mxu0 0
    %492 = vmatpush1.bf16.msra.mxu0 %v343
    %493 = vmatprep.subr.bf16.mxu0 0
    %494 = vmatpush1.bf16.msra.mxu0 %v342
    %495 = vmatprep.subr.bf16.mxu0 0
    %496 = vmatpush1.bf16.msra.mxu0 %v341
    %497 = vmatprep.subr.bf16.mxu0 0
    %498 = vmatpush1.bf16.msra.mxu0 %v340
    %499 = vmatprep.subr.bf16.mxu0 0
    %500 = vmatpush1.bf16.msra.mxu0 %v339
    %501 = vmatprep.subr.bf16.mxu0 0
    %502 = vmatpush1.bf16.msra.mxu0 %v338
    %503 = vmatprep.subr.bf16.mxu0 0
    %504 = vmatpush1.bf16.msra.mxu0 %v337
    %505 = vmatprep.subr.bf16.mxu0 0
    %506 = vmatpush2.bf16.msra.mxu0 0
    %507 = vmatprep.subr.bf16.mxu0 0
    %508 = vmatpush2.bf16.msra.mxu0 0
    %509 = vmatprep.subr.bf16.mxu0 0
    %510 = vmatpush2.bf16.msra.mxu0 0
    %511 = vmatprep.subr.bf16.mxu0 0
    %512 = vmatpush2.bf16.msra.mxu0 0
    %513 = vmatprep.subr.bf16.mxu0 0
    %514 = vmatpush2.bf16.msra.mxu0 0
    %515 = vmatprep.subr.bf16.mxu0 0
    %516 = vmatpush2.bf16.msra.mxu0 0
    %517 = vmatprep.subr.bf16.mxu0 0
    %518 = vmatpush2.bf16.msra.mxu0 0
    %519 = vmatprep.subr.bf16.mxu0 0
    %520 = vmatpush2.bf16.msra.mxu0 0
    %521 = vmatprep.mubr.bf16.mxu0 0
    %522 = vmatmul.mubr.bf16.gmra.mxu0 %v473
    %v523 = vpop.f32.mrf.mxu0
    %v524 = vadd.f32 %v364, %v523
    %v525 = vpop.f32.mrf.mxu0
    %v526 = vpop.f32.mrf.mxu0
    %v527 = vadd.f32 %v369, %v526
    %v528 = vpop.f32.mrf.mxu0
    %529 = vmatprep.mubr.bf16.mxu0 0
    %530 = vmatmul.mubr.bf16.gmra.mxu0 %v474
    %v531 = vpop.f32.mrf.mxu0
    %v532 = vadd.f32 %v374, %v531
    %v533 = vpop.f32.mrf.mxu0
    %v534 = vpop.f32.mrf.mxu0
    %v535 = vadd.f32 %v379, %v534
    %v536 = vpop.f32.mrf.mxu0
    %537 = vmatprep.mubr.bf16.mxu0 0
    %538 = vmatmul.mubr.bf16.gmra.mxu0 %v475
    %v539 = vpop.f32.mrf.mxu0
    %v540 = vadd.f32 %v384, %v539
    %v541 = vpop.f32.mrf.mxu0
    %v542 = vpop.f32.mrf.mxu0
    %v543 = vadd.f32 %v389, %v542
    %v544 = vpop.f32.mrf.mxu0
    %545 = vmatprep.mubr.bf16.mxu0 0
    %546 = vmatmul.mubr.bf16.gmra.mxu0 %v476
    %v547 = vpop.f32.mrf.mxu0
    %v548 = vadd.f32 %v394, %v547
    %v549 = vpop.f32.mrf.mxu0
    %v550 = vpop.f32.mrf.mxu0
    %v551 = vadd.f32 %v399, %v550
    %v552 = vpop.f32.mrf.mxu0
    %553 = vmatprep.mubr.bf16.mxu0 0
    %554 = vmatmul.mubr.bf16.gmra.mxu0 %v477
    %v555 = vpop.f32.mrf.mxu0
    %v556 = vadd.f32 %v404, %v555
    %v557 = vpop.f32.mrf.mxu0
    %v558 = vpop.f32.mrf.mxu0
    %v559 = vadd.f32 %v409, %v558
    %v560 = vpop.f32.mrf.mxu0
    %561 = vmatprep.mubr.bf16.mxu0 0
    %562 = vmatmul.mubr.bf16.gmra.mxu0 %v478
    %v563 = vpop.f32.mrf.mxu0
    %v564 = vadd.f32 %v414, %v563
    %v565 = vpop.f32.mrf.mxu0
    %v566 = vpop.f32.mrf.mxu0
    %v567 = vadd.f32 %v419, %v566
    %v568 = vpop.f32.mrf.mxu0
    %569 = vmatprep.mubr.bf16.mxu0 0
    %570 = vmatmul.mubr.bf16.gmra.mxu0 %v479
    %v571 = vpop.f32.mrf.mxu0
    %v572 = vadd.f32 %v424, %v571
    %v573 = vpop.f32.mrf.mxu0
    %v574 = vpop.f32.mrf.mxu0
    %v575 = vadd.f32 %v429, %v574
    %v576 = vpop.f32.mrf.mxu0
    %577 = vmatprep.mubr.bf16.mxu0 0
    %578 = vmatmul.mubr.bf16.gmra.mxu0 %v480
    %v579 = vpop.f32.mrf.mxu0
    %v580 = vadd.f32 %v434, %v579
    %v581 = vpop.f32.mrf.mxu0
    %v582 = vpop.f32.mrf.mxu0
    %v583 = vadd.f32 %v439, %v582
    %v584 = vpop.f32.mrf.mxu0
    %585 = vdwg.mxu0
    %v586 = vmax.f32 %v524, 0.0
    %v587 = vmax.f32 %v527, 0.0
    %v588 = vmax.f32 %v532, 0.0
    %v589 = vmax.f32 %v535, 0.0
    %v590 = vmax.f32 %v540, 0.0
    %v591 = vmax.f32 %v543, 0.0
    %v592 = vmax.f32 %v548, 0.0
    %v593 = vmax.f32 %v551, 0.0
    %v594 = vmax.f32 %v556, 0.0
    %v595 = vmax.f32 %v559, 0.0
    %v596 = vmax.f32 %v564, 0.0
    %v597 = vmax.f32 %v567, 0.0
    %v598 = vmax.f32 %v572, 0.0
    %v599 = vmax.f32 %v575, 0.0
    %v600 = vmax.f32 %v580, 0.0
    %v601 = vmax.f32 %v583, 0.0
    %v602 = vld [vmem:[%s5] sm:$0xff]
    %v603 = vld [vmem:[%s5 + $0x8] sm:$0xff]
    %v604 = vld [vmem:[%s5 + $0x10] sm:$0xff]
    %v605 = vld [vmem:[%s5 + $0x18] sm:$0xff]
    %v606 = vld [vmem:[%s5 + $0x20] sm:$0xff]
    %v607 = vld [vmem:[%s5 + $0x28] sm:$0xff]
    %v608 = vld [vmem:[%s5 + $0x30] sm:$0xff]
    %v609 = vld [vmem:[%s5 + $0x38] sm:$0xff]
    %v610 = vld [vmem:[%s5 + $0x40] sm:$0xff]
    %v611 = vld [vmem:[%s5 + $0x48] sm:$0xff]
    %v612 = vld [vmem:[%s5 + $0x50] sm:$0xff]
    %v613 = vld [vmem:[%s5 + $0x58] sm:$0xff]
    %v614 = vld [vmem:[%s5 + $0x60] sm:$0xff]
    %v615 = vld [vmem:[%s5 + $0x68] sm:$0xff]
    %v616 = vld [vmem:[%s5 + $0x70] sm:$0xff]
    %v617 = vld [vmem:[%s5 + $0x78] sm:$0xff]
    %619 = vset.pattern.permute.xlu0 0
    %620 = vperm.xlu0 %619, %v602
    %v621 = vpop.permute.xlu0 %620
    %624 = vset.pattern.permute.xlu0 0
    %625 = vperm.xlu0 %624, %v603
    %v626 = vpop.permute.xlu0 %625
    %629 = vset.pattern.permute.xlu0 0
    %630 = vperm.xlu0 %629, %v604
    %v631 = vpop.permute.xlu0 %630
    %634 = vset.pattern.permute.xlu0 0
    %635 = vperm.xlu0 %634, %v605
    %v636 = vpop.permute.xlu0 %635
    %639 = vset.pattern.permute.xlu0 0
    %640 = vperm.xlu0 %639, %v606
    %v641 = vpop.permute.xlu0 %640
    %644 = vset.pattern.permute.xlu0 0
    %645 = vperm.xlu0 %644, %v607
    %v646 = vpop.permute.xlu0 %645
    %649 = vset.pattern.permute.xlu0 0
    %650 = vperm.xlu0 %649, %v608
    %v651 = vpop.permute.xlu0 %650
    %654 = vset.pattern.permute.xlu0 0
    %655 = vperm.xlu0 %654, %v609
    %v656 = vpop.permute.xlu0 %655
    %659 = vset.pattern.permute.xlu0 0
    %660 = vperm.xlu0 %659, %v610
    %v661 = vpop.permute.xlu0 %660
    %664 = vset.pattern.permute.xlu0 0
    %665 = vperm.xlu0 %664, %v611
    %v666 = vpop.permute.xlu0 %665
    %669 = vset.pattern.permute.xlu0 0
    %670 = vperm.xlu0 %669, %v612
    %v671 = vpop.permute.xlu0 %670
    %674 = vset.pattern.permute.xlu0 0
    %675 = vperm.xlu0 %674, %v613
    %v676 = vpop.permute.xlu0 %675
    %679 = vset.pattern.permute.xlu0 0
    %680 = vperm.xlu0 %679, %v614
    %v681 = vpop.permute.xlu0 %680
    %684 = vset.pattern.permute.xlu0 0
    %685 = vperm.xlu0 %684, %v615
    %v686 = vpop.permute.xlu0 %685
    %689 = vset.pattern.permute.xlu0 0
    %690 = vperm.xlu0 %689, %v616
    %v691 = vpop.permute.xlu0 %690
    %694 = vset.pattern.permute.xlu0 0
    %695 = vperm.xlu0 %694, %v617
    %v696 = vpop.permute.xlu0 %695
    %v698 = vmul.f32 %v586, %v621
    %v699 = vmul.f32 %v587, %v626
    %v700 = vmul.f32 %v588, %v631
    %v701 = vmul.f32 %v589, %v636
    %v702 = vmul.f32 %v590, %v641
    %v703 = vmul.f32 %v591, %v646
    %v704 = vmul.f32 %v592, %v651
    %v705 = vmul.f32 %v593, %v656
    %v706 = vmul.f32 %v594, %v661
    %v707 = vmul.f32 %v595, %v666
    %v708 = vmul.f32 %v596, %v671
    %v709 = vmul.f32 %v597, %v676
    %v710 = vmul.f32 %v598, %v681
    %v711 = vmul.f32 %v599, %v686
    %v712 = vmul.f32 %v600, %v691
    %v713 = vmul.f32 %v601, %v696
    %v714 = vadd.f32 %v698, %v699
    %v715 = vadd.f32 %v714, %v700
    %v716 = vadd.f32 %v715, %v701
    %v717 = vadd.f32 %v716, %v702
    %v718 = vadd.f32 %v717, %v703
    %v719 = vadd.f32 %v718, %v704
    %v720 = vadd.f32 %v719, %v705
    %v721 = vadd.f32 %v720, %v706
    %v722 = vadd.f32 %v721, %v707
    %v723 = vadd.f32 %v722, %v708
    %v724 = vadd.f32 %v723, %v709
    %v725 = vadd.f32 %v724, %v710
    %v726 = vadd.f32 %v725, %v711
    %v727 = vadd.f32 %v726, %v712
    %v728 = vadd.f32 %v727, %v713
    %v729 = vrot.slane %v728, 4
    %v730 = vadd.f32 %v728, %v729
    %v731 = vrot.slane %v730, 2
    %v732 = vadd.f32 %v730, %v731
    %v733 = vrot.slane %v732, 1
    %v734 = vadd.f32 %v732, %v733
    %s735 = scalar_lea.vmem %s1, 64
    %v736 = vld [vmem:[%s735] sm:$0xf]
    %v737 = vld [vmem:[%s735 + $0x4] sm:$0xf]
    %v738 = vld [vmem:[%s735 + $0x8] sm:$0xf]
    %v739 = vld [vmem:[%s735 + $0xc] sm:$0xf]
    %v740 = vld [vmem:[%s735 + $0x10] sm:$0xf]
    %v741 = vld [vmem:[%s735 + $0x14] sm:$0xf]
    %v742 = vld [vmem:[%s735 + $0x18] sm:$0xf]
    %v743 = vld [vmem:[%s735 + $0x1c] sm:$0xf]
    %v744 = vld [vmem:[%s735 + $0x20] sm:$0xf]
    %v745 = vld [vmem:[%s735 + $0x24] sm:$0xf]
    %v746 = vld [vmem:[%s735 + $0x28] sm:$0xf]
    %v747 = vld [vmem:[%s735 + $0x2c] sm:$0xf]
    %v748 = vld [vmem:[%s735 + $0x30] sm:$0xf]
    %v749 = vld [vmem:[%s735 + $0x34] sm:$0xf]
    %v750 = vld [vmem:[%s735 + $0x38] sm:$0xf]
    %v751 = vld [vmem:[%s735 + $0x3c] sm:$0xf]
    %s752 = scalar_lea.vmem %s2, 128
    %v753 = vld [vmem:[%s752] sm:$0xff]
    %v754 = vld [vmem:[%s752 + $0x8] sm:$0xff]
    %v755 = vld [vmem:[%s752 + $0x10] sm:$0xff]
    %v756 = vld [vmem:[%s752 + $0x18] sm:$0xff]
    %v757 = vld [vmem:[%s752 + $0x20] sm:$0xff]
    %v758 = vld [vmem:[%s752 + $0x28] sm:$0xff]
    %v759 = vld [vmem:[%s752 + $0x30] sm:$0xff]
    %v760 = vld [vmem:[%s752 + $0x38] sm:$0xff]
    %v761 = vld [vmem:[%s752 + $0x40] sm:$0xff]
    %v762 = vld [vmem:[%s752 + $0x48] sm:$0xff]
    %v763 = vld [vmem:[%s752 + $0x50] sm:$0xff]
    %v764 = vld [vmem:[%s752 + $0x58] sm:$0xff]
    %v765 = vld [vmem:[%s752 + $0x60] sm:$0xff]
    %v766 = vld [vmem:[%s752 + $0x68] sm:$0xff]
    %v767 = vld [vmem:[%s752 + $0x70] sm:$0xff]
    %v768 = vld [vmem:[%s752 + $0x78] sm:$0xff]
    %770 = vset.pattern.permute.xlu0 0
    %771 = vperm.xlu0 %770, %v753
    %v772 = vpop.permute.xlu0 %771
    %775 = vset.pattern.permute.xlu0 0
    %776 = vperm.xlu0 %775, %v754
    %v777 = vpop.permute.xlu0 %776
    %780 = vset.pattern.permute.xlu0 0
    %781 = vperm.xlu0 %780, %v755
    %v782 = vpop.permute.xlu0 %781
    %785 = vset.pattern.permute.xlu0 0
    %786 = vperm.xlu0 %785, %v756
    %v787 = vpop.permute.xlu0 %786
    %790 = vset.pattern.permute.xlu0 0
    %791 = vperm.xlu0 %790, %v757
    %v792 = vpop.permute.xlu0 %791
    %795 = vset.pattern.permute.xlu0 0
    %796 = vperm.xlu0 %795, %v758
    %v797 = vpop.permute.xlu0 %796
    %800 = vset.pattern.permute.xlu0 0
    %801 = vperm.xlu0 %800, %v759
    %v802 = vpop.permute.xlu0 %801
    %805 = vset.pattern.permute.xlu0 0
    %806 = vperm.xlu0 %805, %v760
    %v807 = vpop.permute.xlu0 %806
    %810 = vset.pattern.permute.xlu0 0
    %811 = vperm.xlu0 %810, %v761
    %v812 = vpop.permute.xlu0 %811
    %815 = vset.pattern.permute.xlu0 0
    %816 = vperm.xlu0 %815, %v762
    %v817 = vpop.permute.xlu0 %816
    %820 = vset.pattern.permute.xlu0 0
    %821 = vperm.xlu0 %820, %v763
    %v822 = vpop.permute.xlu0 %821
    %825 = vset.pattern.permute.xlu0 0
    %826 = vperm.xlu0 %825, %v764
    %v827 = vpop.permute.xlu0 %826
    %830 = vset.pattern.permute.xlu0 0
    %831 = vperm.xlu0 %830, %v765
    %v832 = vpop.permute.xlu0 %831
    %835 = vset.pattern.permute.xlu0 0
    %836 = vperm.xlu0 %835, %v766
    %v837 = vpop.permute.xlu0 %836
    %840 = vset.pattern.permute.xlu0 0
    %841 = vperm.xlu0 %840, %v767
    %v842 = vpop.permute.xlu0 %841
    %845 = vset.pattern.permute.xlu0 0
    %846 = vperm.xlu0 %845, %v768
    %v847 = vpop.permute.xlu0 %846
    %v865 = vunpack.c.l.b16 %v736
    %v866 = vunpack.c.l.b16 %v737
    %v867 = vunpack.c.l.b16 %v738
    %v868 = vunpack.c.l.b16 %v739
    %v869 = vunpack.c.l.b16 %v740
    %v870 = vunpack.c.l.b16 %v741
    %v871 = vunpack.c.l.b16 %v742
    %v872 = vunpack.c.l.b16 %v743
    %v873 = vunpack.c.l.b16 %v744
    %v874 = vunpack.c.l.b16 %v745
    %v875 = vunpack.c.l.b16 %v746
    %v876 = vunpack.c.l.b16 %v747
    %v877 = vunpack.c.l.b16 %v748
    %v878 = vunpack.c.l.b16 %v749
    %v879 = vunpack.c.l.b16 %v750
    %v880 = vunpack.c.l.b16 %v751
    %v881 = vpack.c.b16 %v866, %v865
    %v882 = vpack.c.b16 %v868, %v867
    %v883 = vpack.c.b16 %v870, %v869
    %v884 = vpack.c.b16 %v872, %v871
    %v885 = vpack.c.b16 %v874, %v873
    %v886 = vpack.c.b16 %v876, %v875
    %v887 = vpack.c.b16 %v878, %v877
    %v888 = vpack.c.b16 %v880, %v879
    %v890 = vsel %vm179, %v881, 0
    %v893 = vsel %vm179, %v882, 0
    %v896 = vsel %vm179, %v883, 0
    %v899 = vsel %vm179, %v884, 0
    %v902 = vsel %vm179, %v885, 0
    %v905 = vsel %vm179, %v886, 0
    %v908 = vsel %vm179, %v887, 0
    %v911 = vsel %vm179, %v888, 0
    %913 = vmatprep.subr.bf16.mxu0 0
    %914 = vmatpush1.bf16.msra.mxu0 0
    %915 = vmatprep.subr.bf16.mxu0 0
    %916 = vmatpush1.bf16.msra.mxu0 0
    %917 = vmatprep.subr.bf16.mxu0 0
    %918 = vmatpush1.bf16.msra.mxu0 0
    %919 = vmatprep.subr.bf16.mxu0 0
    %920 = vmatpush1.bf16.msra.mxu0 0
    %921 = vmatprep.subr.bf16.mxu0 0
    %922 = vmatpush1.bf16.msra.mxu0 0
    %923 = vmatprep.subr.bf16.mxu0 0
    %924 = vmatpush1.bf16.msra.mxu0 0
    %925 = vmatprep.subr.bf16.mxu0 0
    %926 = vmatpush1.bf16.msra.mxu0 0
    %927 = vmatprep.subr.bf16.mxu0 0
    %928 = vmatpush1.bf16.msra.mxu0 %v206
    %929 = vmatprep.subr.bf16.mxu0 0
    %930 = vmatpush2.bf16.msra.mxu0 0
    %931 = vmatprep.subr.bf16.mxu0 0
    %932 = vmatpush2.bf16.msra.mxu0 0
    %933 = vmatprep.subr.bf16.mxu0 0
    %934 = vmatpush2.bf16.msra.mxu0 0
    %935 = vmatprep.subr.bf16.mxu0 0
    %936 = vmatpush2.bf16.msra.mxu0 0
    %937 = vmatprep.subr.bf16.mxu0 0
    %938 = vmatpush2.bf16.msra.mxu0 0
    %939 = vmatprep.subr.bf16.mxu0 0
    %940 = vmatpush2.bf16.msra.mxu0 0
    %941 = vmatprep.subr.bf16.mxu0 0
    %942 = vmatpush2.bf16.msra.mxu0 0
    %943 = vmatprep.subr.bf16.mxu0 0
    %944 = vmatpush2.bf16.msra.mxu0 0
    %945 = vmatprep.mubr.bf16.mxu0 0
    %946 = vmatmul.mubr.bf16.gmra.mxu0 %v890
    %v947 = vpop.f32.mrf.mxu0
    %v948 = vadd.f32 %v772, %v947
    %v949 = vpop.f32.mrf.mxu0
    %v950 = vpop.f32.mrf.mxu0
    %v951 = vadd.f32 %v777, %v950
    %v952 = vpop.f32.mrf.mxu0
    %953 = vmatprep.mubr.bf16.mxu0 0
    %954 = vmatmul.mubr.bf16.gmra.mxu0 %v893
    %v955 = vpop.f32.mrf.mxu0
    %v956 = vadd.f32 %v782, %v955
    %v957 = vpop.f32.mrf.mxu0
    %v958 = vpop.f32.mrf.mxu0
    %v959 = vadd.f32 %v787, %v958
    %v960 = vpop.f32.mrf.mxu0
    %961 = vmatprep.mubr.bf16.mxu0 0
    %962 = vmatmul.mubr.bf16.gmra.mxu0 %v896
    %v963 = vpop.f32.mrf.mxu0
    %v964 = vadd.f32 %v792, %v963
    %v965 = vpop.f32.mrf.mxu0
    %v966 = vpop.f32.mrf.mxu0
    %v967 = vadd.f32 %v797, %v966
    %v968 = vpop.f32.mrf.mxu0
    %969 = vmatprep.mubr.bf16.mxu0 0
    %970 = vmatmul.mubr.bf16.gmra.mxu0 %v899
    %v971 = vpop.f32.mrf.mxu0
    %v972 = vadd.f32 %v802, %v971
    %v973 = vpop.f32.mrf.mxu0
    %v974 = vpop.f32.mrf.mxu0
    %v975 = vadd.f32 %v807, %v974
    %v976 = vpop.f32.mrf.mxu0
    %977 = vmatprep.mubr.bf16.mxu0 0
    %978 = vmatmul.mubr.bf16.gmra.mxu0 %v902
    %v979 = vpop.f32.mrf.mxu0
    %v980 = vadd.f32 %v812, %v979
    %v981 = vpop.f32.mrf.mxu0
    %v982 = vpop.f32.mrf.mxu0
    %v983 = vadd.f32 %v817, %v982
    %v984 = vpop.f32.mrf.mxu0
    %985 = vmatprep.mubr.bf16.mxu0 0
    %986 = vmatmul.mubr.bf16.gmra.mxu0 %v905
    %v987 = vpop.f32.mrf.mxu0
    %v988 = vadd.f32 %v822, %v987
    %v989 = vpop.f32.mrf.mxu0
    %v990 = vpop.f32.mrf.mxu0
    %v991 = vadd.f32 %v827, %v990
    %v992 = vpop.f32.mrf.mxu0
    %993 = vmatprep.mubr.bf16.mxu0 0
    %994 = vmatmul.mubr.bf16.gmra.mxu0 %v908
    %v995 = vpop.f32.mrf.mxu0
    %v996 = vadd.f32 %v832, %v995
    %v997 = vpop.f32.mrf.mxu0
    %v998 = vpop.f32.mrf.mxu0
    %v999 = vadd.f32 %v837, %v998
    %v1000 = vpop.f32.mrf.mxu0
    %1001 = vmatprep.mubr.bf16.mxu0 0
    %1002 = vmatmul.mubr.bf16.gmra.mxu0 %v911
    %v1003 = vpop.f32.mrf.mxu0
    %v1004 = vadd.f32 %v842, %v1003
    %v1005 = vpop.f32.mrf.mxu0
    %v1006 = vpop.f32.mrf.mxu0
    %v1007 = vadd.f32 %v847, %v1006
    %v1008 = vpop.f32.mrf.mxu0
    %1009 = vdwg.mxu0
    %v1010 = vmax.f32 %v948, 0.0
    %v1011 = vmax.f32 %v951, 0.0
    %v1012 = vmax.f32 %v956, 0.0
    %v1013 = vmax.f32 %v959, 0.0
    %v1014 = vmax.f32 %v964, 0.0
    %v1015 = vmax.f32 %v967, 0.0
    %v1016 = vmax.f32 %v972, 0.0
    %v1017 = vmax.f32 %v975, 0.0
    %v1018 = vmax.f32 %v980, 0.0
    %v1019 = vmax.f32 %v983, 0.0
    %v1020 = vmax.f32 %v988, 0.0
    %v1021 = vmax.f32 %v991, 0.0
    %v1022 = vmax.f32 %v996, 0.0
    %v1023 = vmax.f32 %v999, 0.0
    %v1024 = vmax.f32 %v1004, 0.0
    %v1025 = vmax.f32 %v1007, 0.0
    %s1026 = scalar_lea.vmem %s3, 64
    %v1027 = vld [vmem:[%s1026] sm:$0xf]
    %v1028 = vld [vmem:[%s1026 + $0x4] sm:$0xf]
    %v1029 = vld [vmem:[%s1026 + $0x8] sm:$0xf]
    %v1030 = vld [vmem:[%s1026 + $0xc] sm:$0xf]
    %v1031 = vld [vmem:[%s1026 + $0x10] sm:$0xf]
    %v1032 = vld [vmem:[%s1026 + $0x14] sm:$0xf]
    %v1033 = vld [vmem:[%s1026 + $0x18] sm:$0xf]
    %v1034 = vld [vmem:[%s1026 + $0x1c] sm:$0xf]
    %v1035 = vld [vmem:[%s1026 + $0x20] sm:$0xf]
    %v1036 = vld [vmem:[%s1026 + $0x24] sm:$0xf]
    %v1037 = vld [vmem:[%s1026 + $0x28] sm:$0xf]
    %v1038 = vld [vmem:[%s1026 + $0x2c] sm:$0xf]
    %v1039 = vld [vmem:[%s1026 + $0x30] sm:$0xf]
    %v1040 = vld [vmem:[%s1026 + $0x34] sm:$0xf]
    %v1041 = vld [vmem:[%s1026 + $0x38] sm:$0xf]
    %v1042 = vld [vmem:[%s1026 + $0x3c] sm:$0xf]
    %v1043 = vpack.c.bf16 %v1011, %v1010
    %v1044 = vpack.c.bf16 %v1013, %v1012
    %v1045 = vpack.c.bf16 %v1015, %v1014
    %v1046 = vpack.c.bf16 %v1017, %v1016
    %v1047 = vpack.c.bf16 %v1019, %v1018
    %v1048 = vpack.c.bf16 %v1021, %v1020
    %v1049 = vpack.c.bf16 %v1023, %v1022
    %v1050 = vpack.c.bf16 %v1025, %v1024
    %s1051 = scalar_lea.vmem %s4, 128
    %v1052 = vld [vmem:[%s1051] sm:$0xff]
    %v1053 = vld [vmem:[%s1051 + $0x8] sm:$0xff]
    %v1054 = vld [vmem:[%s1051 + $0x10] sm:$0xff]
    %v1055 = vld [vmem:[%s1051 + $0x18] sm:$0xff]
    %v1056 = vld [vmem:[%s1051 + $0x20] sm:$0xff]
    %v1057 = vld [vmem:[%s1051 + $0x28] sm:$0xff]
    %v1058 = vld [vmem:[%s1051 + $0x30] sm:$0xff]
    %v1059 = vld [vmem:[%s1051 + $0x38] sm:$0xff]
    %v1060 = vld [vmem:[%s1051 + $0x40] sm:$0xff]
    %v1061 = vld [vmem:[%s1051 + $0x48] sm:$0xff]
    %v1062 = vld [vmem:[%s1051 + $0x50] sm:$0xff]
    %v1063 = vld [vmem:[%s1051 + $0x58] sm:$0xff]
    %v1064 = vld [vmem:[%s1051 + $0x60] sm:$0xff]
    %v1065 = vld [vmem:[%s1051 + $0x68] sm:$0xff]
    %v1066 = vld [vmem:[%s1051 + $0x70] sm:$0xff]
    %v1067 = vld [vmem:[%s1051 + $0x78] sm:$0xff]
    %1069 = vset.pattern.permute.xlu0 0
    %1070 = vperm.xlu0 %1069, %v1052
    %v1071 = vpop.permute.xlu0 %1070
    %1074 = vset.pattern.permute.xlu0 0
    %1075 = vperm.xlu0 %1074, %v1053
    %v1076 = vpop.permute.xlu0 %1075
    %1079 = vset.pattern.permute.xlu0 0
    %1080 = vperm.xlu0 %1079, %v1054
    %v1081 = vpop.permute.xlu0 %1080
    %1084 = vset.pattern.permute.xlu0 0
    %1085 = vperm.xlu0 %1084, %v1055
    %v1086 = vpop.permute.xlu0 %1085
    %1089 = vset.pattern.permute.xlu0 0
    %1090 = vperm.xlu0 %1089, %v1056
    %v1091 = vpop.permute.xlu0 %1090
    %1094 = vset.pattern.permute.xlu0 0
    %1095 = vperm.xlu0 %1094, %v1057
    %v1096 = vpop.permute.xlu0 %1095
    %1099 = vset.pattern.permute.xlu0 0
    %1100 = vperm.xlu0 %1099, %v1058
    %v1101 = vpop.permute.xlu0 %1100
    %1104 = vset.pattern.permute.xlu0 0
    %1105 = vperm.xlu0 %1104, %v1059
    %v1106 = vpop.permute.xlu0 %1105
    %1109 = vset.pattern.permute.xlu0 0
    %1110 = vperm.xlu0 %1109, %v1060
    %v1111 = vpop.permute.xlu0 %1110
    %1114 = vset.pattern.permute.xlu0 0
    %1115 = vperm.xlu0 %1114, %v1061
    %v1116 = vpop.permute.xlu0 %1115
    %1119 = vset.pattern.permute.xlu0 0
    %1120 = vperm.xlu0 %1119, %v1062
    %v1121 = vpop.permute.xlu0 %1120
    %1124 = vset.pattern.permute.xlu0 0
    %1125 = vperm.xlu0 %1124, %v1063
    %v1126 = vpop.permute.xlu0 %1125
    %1129 = vset.pattern.permute.xlu0 0
    %1130 = vperm.xlu0 %1129, %v1064
    %v1131 = vpop.permute.xlu0 %1130
    %1134 = vset.pattern.permute.xlu0 0
    %1135 = vperm.xlu0 %1134, %v1065
    %v1136 = vpop.permute.xlu0 %1135
    %1139 = vset.pattern.permute.xlu0 0
    %1140 = vperm.xlu0 %1139, %v1066
    %v1141 = vpop.permute.xlu0 %1140
    %1144 = vset.pattern.permute.xlu0 0
    %1145 = vperm.xlu0 %1144, %v1067
    %v1146 = vpop.permute.xlu0 %1145
    %v1164 = vunpack.c.l.b16 %v1027
    %v1165 = vunpack.c.l.b16 %v1028
    %v1166 = vunpack.c.l.b16 %v1029
    %v1167 = vunpack.c.l.b16 %v1030
    %v1168 = vunpack.c.l.b16 %v1031
    %v1169 = vunpack.c.l.b16 %v1032
    %v1170 = vunpack.c.l.b16 %v1033
    %v1171 = vunpack.c.l.b16 %v1034
    %v1172 = vunpack.c.l.b16 %v1035
    %v1173 = vunpack.c.l.b16 %v1036
    %v1174 = vunpack.c.l.b16 %v1037
    %v1175 = vunpack.c.l.b16 %v1038
    %v1176 = vunpack.c.l.b16 %v1039
    %v1177 = vunpack.c.l.b16 %v1040
    %v1178 = vunpack.c.l.b16 %v1041
    %v1179 = vunpack.c.l.b16 %v1042
    %v1180 = vpack.c.b16 %v1165, %v1164
    %v1181 = vpack.c.b16 %v1167, %v1166
    %v1182 = vpack.c.b16 %v1169, %v1168
    %v1183 = vpack.c.b16 %v1171, %v1170
    %v1184 = vpack.c.b16 %v1173, %v1172
    %v1185 = vpack.c.b16 %v1175, %v1174
    %v1186 = vpack.c.b16 %v1177, %v1176
    %v1187 = vpack.c.b16 %v1179, %v1178
    %1196 = vmatprep.subr.bf16.mxu0 0
    %1197 = vmatpush1.bf16.msra.mxu0 %v1050
    %1198 = vmatprep.subr.bf16.mxu0 0
    %1199 = vmatpush1.bf16.msra.mxu0 %v1049
    %1200 = vmatprep.subr.bf16.mxu0 0
    %1201 = vmatpush1.bf16.msra.mxu0 %v1048
    %1202 = vmatprep.subr.bf16.mxu0 0
    %1203 = vmatpush1.bf16.msra.mxu0 %v1047
    %1204 = vmatprep.subr.bf16.mxu0 0
    %1205 = vmatpush1.bf16.msra.mxu0 %v1046
    %1206 = vmatprep.subr.bf16.mxu0 0
    %1207 = vmatpush1.bf16.msra.mxu0 %v1045
    %1208 = vmatprep.subr.bf16.mxu0 0
    %1209 = vmatpush1.bf16.msra.mxu0 %v1044
    %1210 = vmatprep.subr.bf16.mxu0 0
    %1211 = vmatpush1.bf16.msra.mxu0 %v1043
    %1212 = vmatprep.subr.bf16.mxu0 0
    %1213 = vmatpush2.bf16.msra.mxu0 0
    %1214 = vmatprep.subr.bf16.mxu0 0
    %1215 = vmatpush2.bf16.msra.mxu0 0
    %1216 = vmatprep.subr.bf16.mxu0 0
    %1217 = vmatpush2.bf16.msra.mxu0 0
    %1218 = vmatprep.subr.bf16.mxu0 0
    %1219 = vmatpush2.bf16.msra.mxu0 0
    %1220 = vmatprep.subr.bf16.mxu0 0
    %1221 = vmatpush2.bf16.msra.mxu0 0
    %1222 = vmatprep.subr.bf16.mxu0 0
    %1223 = vmatpush2.bf16.msra.mxu0 0
    %1224 = vmatprep.subr.bf16.mxu0 0
    %1225 = vmatpush2.bf16.msra.mxu0 0
    %1226 = vmatprep.subr.bf16.mxu0 0
    %1227 = vmatpush2.bf16.msra.mxu0 0
    %1228 = vmatprep.mubr.bf16.mxu0 0
    %1229 = vmatmul.mubr.bf16.gmra.mxu0 %v1180
    %v1230 = vpop.f32.mrf.mxu0
    %v1231 = vadd.f32 %v1071, %v1230
    %v1232 = vpop.f32.mrf.mxu0
    %v1233 = vpop.f32.mrf.mxu0
    %v1234 = vadd.f32 %v1076, %v1233
    %v1235 = vpop.f32.mrf.mxu0
    %1236 = vmatprep.mubr.bf16.mxu0 0
    %1237 = vmatmul.mubr.bf16.gmra.mxu0 %v1181
    %v1238 = vpop.f32.mrf.mxu0
    %v1239 = vadd.f32 %v1081, %v1238
    %v1240 = vpop.f32.mrf.mxu0
    %v1241 = vpop.f32.mrf.mxu0
    %v1242 = vadd.f32 %v1086, %v1241
    %v1243 = vpop.f32.mrf.mxu0
    %1244 = vmatprep.mubr.bf16.mxu0 0
    %1245 = vmatmul.mubr.bf16.gmra.mxu0 %v1182
    %v1246 = vpop.f32.mrf.mxu0
    %v1247 = vadd.f32 %v1091, %v1246
    %v1248 = vpop.f32.mrf.mxu0
    %v1249 = vpop.f32.mrf.mxu0
    %v1250 = vadd.f32 %v1096, %v1249
    %v1251 = vpop.f32.mrf.mxu0
    %1252 = vmatprep.mubr.bf16.mxu0 0
    %1253 = vmatmul.mubr.bf16.gmra.mxu0 %v1183
    %v1254 = vpop.f32.mrf.mxu0
    %v1255 = vadd.f32 %v1101, %v1254
    %v1256 = vpop.f32.mrf.mxu0
    %v1257 = vpop.f32.mrf.mxu0
    %v1258 = vadd.f32 %v1106, %v1257
    %v1259 = vpop.f32.mrf.mxu0
    %1260 = vmatprep.mubr.bf16.mxu0 0
    %1261 = vmatmul.mubr.bf16.gmra.mxu0 %v1184
    %v1262 = vpop.f32.mrf.mxu0
    %v1263 = vadd.f32 %v1111, %v1262
    %v1264 = vpop.f32.mrf.mxu0
    %v1265 = vpop.f32.mrf.mxu0
    %v1266 = vadd.f32 %v1116, %v1265
    %v1267 = vpop.f32.mrf.mxu0
    %1268 = vmatprep.mubr.bf16.mxu0 0
    %1269 = vmatmul.mubr.bf16.gmra.mxu0 %v1185
    %v1270 = vpop.f32.mrf.mxu0
    %v1271 = vadd.f32 %v1121, %v1270
    %v1272 = vpop.f32.mrf.mxu0
    %v1273 = vpop.f32.mrf.mxu0
    %v1274 = vadd.f32 %v1126, %v1273
    %v1275 = vpop.f32.mrf.mxu0
    %1276 = vmatprep.mubr.bf16.mxu0 0
    %1277 = vmatmul.mubr.bf16.gmra.mxu0 %v1186
    %v1278 = vpop.f32.mrf.mxu0
    %v1279 = vadd.f32 %v1131, %v1278
    %v1280 = vpop.f32.mrf.mxu0
    %v1281 = vpop.f32.mrf.mxu0
    %v1282 = vadd.f32 %v1136, %v1281
    %v1283 = vpop.f32.mrf.mxu0
    %1284 = vmatprep.mubr.bf16.mxu0 0
    %1285 = vmatmul.mubr.bf16.gmra.mxu0 %v1187
    %v1286 = vpop.f32.mrf.mxu0
    %v1287 = vadd.f32 %v1141, %v1286
    %v1288 = vpop.f32.mrf.mxu0
    %v1289 = vpop.f32.mrf.mxu0
    %v1290 = vadd.f32 %v1146, %v1289
    %v1291 = vpop.f32.mrf.mxu0
    %1292 = vdwg.mxu0
    %v1293 = vmax.f32 %v1231, 0.0
    %v1294 = vmax.f32 %v1234, 0.0
    %v1295 = vmax.f32 %v1239, 0.0
    %v1296 = vmax.f32 %v1242, 0.0
    %v1297 = vmax.f32 %v1247, 0.0
    %v1298 = vmax.f32 %v1250, 0.0
    %v1299 = vmax.f32 %v1255, 0.0
    %v1300 = vmax.f32 %v1258, 0.0
    %v1301 = vmax.f32 %v1263, 0.0
    %v1302 = vmax.f32 %v1266, 0.0
    %v1303 = vmax.f32 %v1271, 0.0
    %v1304 = vmax.f32 %v1274, 0.0
    %v1305 = vmax.f32 %v1279, 0.0
    %v1306 = vmax.f32 %v1282, 0.0
    %v1307 = vmax.f32 %v1287, 0.0
    %v1308 = vmax.f32 %v1290, 0.0
    %s1309 = scalar_lea.vmem %s5, 128
    %v1310 = vld [vmem:[%s1309] sm:$0xff]
    %v1311 = vld [vmem:[%s1309 + $0x8] sm:$0xff]
    %v1312 = vld [vmem:[%s1309 + $0x10] sm:$0xff]
    %v1313 = vld [vmem:[%s1309 + $0x18] sm:$0xff]
    %v1314 = vld [vmem:[%s1309 + $0x20] sm:$0xff]
    %v1315 = vld [vmem:[%s1309 + $0x28] sm:$0xff]
    %v1316 = vld [vmem:[%s1309 + $0x30] sm:$0xff]
    %v1317 = vld [vmem:[%s1309 + $0x38] sm:$0xff]
    %v1318 = vld [vmem:[%s1309 + $0x40] sm:$0xff]
    %v1319 = vld [vmem:[%s1309 + $0x48] sm:$0xff]
    %v1320 = vld [vmem:[%s1309 + $0x50] sm:$0xff]
    %v1321 = vld [vmem:[%s1309 + $0x58] sm:$0xff]
    %v1322 = vld [vmem:[%s1309 + $0x60] sm:$0xff]
    %v1323 = vld [vmem:[%s1309 + $0x68] sm:$0xff]
    %v1324 = vld [vmem:[%s1309 + $0x70] sm:$0xff]
    %v1325 = vld [vmem:[%s1309 + $0x78] sm:$0xff]
    %1327 = vset.pattern.permute.xlu0 0
    %1328 = vperm.xlu0 %1327, %v1310
    %v1329 = vpop.permute.xlu0 %1328
    %1332 = vset.pattern.permute.xlu0 0
    %1333 = vperm.xlu0 %1332, %v1311
    %v1334 = vpop.permute.xlu0 %1333
    %1337 = vset.pattern.permute.xlu0 0
    %1338 = vperm.xlu0 %1337, %v1312
    %v1339 = vpop.permute.xlu0 %1338
    %1342 = vset.pattern.permute.xlu0 0
    %1343 = vperm.xlu0 %1342, %v1313
    %v1344 = vpop.permute.xlu0 %1343
    %1347 = vset.pattern.permute.xlu0 0
    %1348 = vperm.xlu0 %1347, %v1314
    %v1349 = vpop.permute.xlu0 %1348
    %1352 = vset.pattern.permute.xlu0 0
    %1353 = vperm.xlu0 %1352, %v1315
    %v1354 = vpop.permute.xlu0 %1353
    %1357 = vset.pattern.permute.xlu0 0
    %1358 = vperm.xlu0 %1357, %v1316
    %v1359 = vpop.permute.xlu0 %1358
    %1362 = vset.pattern.permute.xlu0 0
    %1363 = vperm.xlu0 %1362, %v1317
    %v1364 = vpop.permute.xlu0 %1363
    %1367 = vset.pattern.permute.xlu0 0
    %1368 = vperm.xlu0 %1367, %v1318
    %v1369 = vpop.permute.xlu0 %1368
    %1372 = vset.pattern.permute.xlu0 0
    %1373 = vperm.xlu0 %1372, %v1319
    %v1374 = vpop.permute.xlu0 %1373
    %1377 = vset.pattern.permute.xlu0 0
    %1378 = vperm.xlu0 %1377, %v1320
    %v1379 = vpop.permute.xlu0 %1378
    %1382 = vset.pattern.permute.xlu0 0
    %1383 = vperm.xlu0 %1382, %v1321
    %v1384 = vpop.permute.xlu0 %1383
    %1387 = vset.pattern.permute.xlu0 0
    %1388 = vperm.xlu0 %1387, %v1322
    %v1389 = vpop.permute.xlu0 %1388
    %1392 = vset.pattern.permute.xlu0 0
    %1393 = vperm.xlu0 %1392, %v1323
    %v1394 = vpop.permute.xlu0 %1393
    %1397 = vset.pattern.permute.xlu0 0
    %1398 = vperm.xlu0 %1397, %v1324
    %v1399 = vpop.permute.xlu0 %1398
    %1402 = vset.pattern.permute.xlu0 0
    %1403 = vperm.xlu0 %1402, %v1325
    %v1404 = vpop.permute.xlu0 %1403
    %v1406 = vmul.f32 %v1293, %v1329
    %v1407 = vmul.f32 %v1294, %v1334
    %v1408 = vmul.f32 %v1295, %v1339
    %v1409 = vmul.f32 %v1296, %v1344
    %v1410 = vmul.f32 %v1297, %v1349
    %v1411 = vmul.f32 %v1298, %v1354
    %v1412 = vmul.f32 %v1299, %v1359
    %v1413 = vmul.f32 %v1300, %v1364
    %v1414 = vmul.f32 %v1301, %v1369
    %v1415 = vmul.f32 %v1302, %v1374
    %v1416 = vmul.f32 %v1303, %v1379
    %v1417 = vmul.f32 %v1304, %v1384
    %v1418 = vmul.f32 %v1305, %v1389
    %v1419 = vmul.f32 %v1306, %v1394
    %v1420 = vmul.f32 %v1307, %v1399
    %v1421 = vmul.f32 %v1308, %v1404
    %v1422 = vadd.f32 %v1406, %v1407
    %v1423 = vadd.f32 %v1422, %v1408
    %v1424 = vadd.f32 %v1423, %v1409
    %v1425 = vadd.f32 %v1424, %v1410
    %v1426 = vadd.f32 %v1425, %v1411
    %v1427 = vadd.f32 %v1426, %v1412
    %v1428 = vadd.f32 %v1427, %v1413
    %v1429 = vadd.f32 %v1428, %v1414
    %v1430 = vadd.f32 %v1429, %v1415
    %v1431 = vadd.f32 %v1430, %v1416
    %v1432 = vadd.f32 %v1431, %v1417
    %v1433 = vadd.f32 %v1432, %v1418
    %v1434 = vadd.f32 %v1433, %v1419
    %v1435 = vadd.f32 %v1434, %v1420
    %v1436 = vadd.f32 %v1435, %v1421
    %v1437 = vrot.slane %v1436, 4
    %v1438 = vadd.f32 %v1436, %v1437
    %v1439 = vrot.slane %v1438, 2
    %v1440 = vadd.f32 %v1438, %v1439
    %v1441 = vrot.slane %v1440, 1
    %v1442 = vadd.f32 %v1440, %v1441
    %vm1443 = vcmask 1040384
    %v1444 = vsel %vm1443, %v734, %v1442
    %1445 = vst [vmem:[#allocation2] sm:$0x3] %v1444
    // Predicated region
    $region26: #{tpu_custom_call.1} parent=1 // pred_check
      _
    $region27: #{tpu_custom_call.1} parent=1 // pred_check_branch
      %1447 = sbr.rel (0) target = $region29
    $region28: #{tpu_custom_call.1} parent=1 // pred_region
      %s1449 = ssub.s32 32, 32
      %1450 = vsyncadd [#allocation3], %s1449
      %s1452 = sshll.u32 [#allocation2], 4
      %s1453 = int_to_ptr.vmem [resolvable:$true] %s1452
      %1455 = dma.vmem_to_hbm [thread:$0]  %s1453, 32, %s6, [#allocation3]
    $region29: #{tpu_custom_call.1} parent=1 // pred_fallthru
      _
    // Predicated region
    $region30: #{tpu_custom_call.1} parent=1 // pred_check
      _
    $region31: #{tpu_custom_call.1} parent=1 // pred_check_branch
      %1457 = sbr.rel (0) target = $region33
    $region32: #{tpu_custom_call.1} parent=1 // pred_region
      %1458 = dma.done [#allocation3], 32
    $region33: #{tpu_custom_call.1} parent=1 // pred_fallthru
      _
    %1459 = vsyncpa [#allocation3], 1

</llo_original>
